<compile_context>
chip_gen: v7x
topology: tpu7x:2x2x1
jax: 0.10.0
libtpu: 0.0.40
codegen_flags: <defaults>
</compile_context>

<pallas_src>
import functools

import numpy as np
import jax
import jax.numpy as jnp
from jax import lax
from jax.experimental import pallas as pl
from jax.experimental.pallas import tpu as pltpu

LANES = 128


# -------------------- anchor generation (glue, deterministic numpy) ---------
def generate_anchors_single_pyramid(scales, ratios, shape, feature_stride,
                                    anchor_stride):
    scales, ratios = np.meshgrid(np.array(scales, dtype=np.float64),
                                 np.array(ratios, dtype=np.float64))
    scales = scales.flatten()
    ratios = ratios.flatten()
    heights = scales / np.sqrt(ratios)
    widths = scales * np.sqrt(ratios)
    shifts_y = np.arange(0, shape[0], anchor_stride) * feature_stride
    shifts_x = np.arange(0, shape[1], anchor_stride) * feature_stride
    shifts_x, shifts_y = np.meshgrid(shifts_x, shifts_y)
    box_widths, box_centers_x = np.meshgrid(widths, shifts_x)
    box_heights, box_centers_y = np.meshgrid(heights, shifts_y)
    box_centers = np.stack([box_centers_x, box_centers_y], axis=2).reshape([-1, 2])
    box_sizes = np.stack([box_widths, box_heights], axis=2).reshape([-1, 2])
    boxes = np.concatenate([box_centers - 0.5 * (box_sizes - 1),
                            box_centers + 0.5 * (box_sizes - 1)], axis=1)
    return boxes  # (H*W*A, 4)  as (x1, y1, x2, y2)


def generate_anchors_all_pyramids(scales, ratios, feat_shapes,
                                  feature_strides, anchor_stride):
    anchors = []
    for i in range(len(scales)):
        anchors.append(generate_anchors_single_pyramid(
            [scales[i]], ratios, feat_shapes[i], feature_strides[i],
            anchor_stride))
    return np.concatenate(anchors, axis=0).astype(np.float32)


# -------------------- Pallas kernel 1: bbox_transform_inv + clip_boxes ------
def _decode_clip_kernel(im_info_ref, anchors_ref, deltas_ref, out_ref):
    # anchors_ref / deltas_ref / out_ref : (4, S_blk, 128) coordinate-major
    # slabs (coord index on the leading axis, anchors spread over sublane/lane).
    b = pl.program_id(1)          # batch is the innermost grid axis

    ax1 = anchors_ref[0]          # each (S_blk, 128) full slab
    ay1 = anchors_ref[1]
    ax2 = anchors_ref[2]
    ay2 = anchors_ref[3]

    dx = deltas_ref[0]
    dy = deltas_ref[1]
    dw = deltas_ref[2]
    dh = deltas_ref[3]

    widths = ax2 - ax1 + 1.0
    heights = ay2 - ay1 + 1.0
    ctr_x = ax1 + 0.5 * widths
    ctr_y = ay1 + 0.5 * heights

    pred_ctr_x = dx * widths + ctr_x
    pred_ctr_y = dy * heights + ctr_y
    pred_w = jnp.exp(dw) * widths
    pred_h = jnp.exp(dh) * heights

    x1 = pred_ctr_x - 0.5 * pred_w
    y1 = pred_ctr_y - 0.5 * pred_h
    x2 = pred_ctr_x + 0.5 * pred_w
    y2 = pred_ctr_y + 0.5 * pred_h

    im_h = im_info_ref[b, 0]      # image height
    im_w = im_info_ref[b, 1]      # image width

    # Single full-tile store (no per-row masked stores).
    out_ref[...] = jnp.stack([
        jnp.clip(x1, 0.0, im_w - 1.0),
        jnp.clip(y1, 0.0, im_h - 1.0),
        jnp.clip(x2, 0.0, im_w - 1.0),
        jnp.clip(y2, 0.0, im_h - 1.0),
    ], axis=0)


def bbox_transform_clip_pallas(anchors, bbox_deltas, im_info):
    """anchors (N,4), bbox_deltas (B,N,4), im_info (B,3) -> proposals (B,4,N)."""
    B, N, _ = bbox_deltas.shape

    # Pad N so it reshapes into (S, 128) with S a multiple of 8.
    unit = 8 * LANES
    n_pad = ((N + unit - 1) // unit) * unit
    s_total = n_pad // LANES                       # multiple of 8

    # Largest (8,128)-aligned tile that divides the padded range, <= 8192 anchors.
    s_blk = s_total
    if s_blk > 64:
        for cand in (64, 56, 48, 40, 32, 24, 16, 8):
            if s_total % cand == 0:
                s_blk = cand
                break

    # Coordinate-major layout; pad with jnp.pad (single pass, no zeros+set).
    anchors_cm = jnp.pad(anchors.astype(jnp.float32).T,
                         ((0, 0), (0, n_pad - N))).reshape(4, s_total, LANES)
    deltas_cm = jnp.pad(jnp.transpose(bbox_deltas.astype(jnp.float32), (0, 2, 1)),
                        ((0, 0), (0, 0), (0, n_pad - N))
                        ).reshape(B, 4, s_total, LANES)

    # Batch innermost -> anchors block index constant across consecutive steps,
    # so the anchors tile is fetched once per anchor-tile, not once per (tile,B).
    grid = (pl.cdiv(s_total, s_blk), B)

    out_cm = pl.pallas_call(
        _decode_clip_kernel,
        out_shape=jax.ShapeDtypeStruct((B, 4, s_total, LANES), jnp.float32),
        grid_spec=pltpu.PrefetchScalarGridSpec(
            num_scalar_prefetch=1,                 # im_info lives in SMEM
            grid=grid,
            in_specs=[
                pl.BlockSpec((4, s_blk, LANES), lambda n, b, im: (0, n, 0)),
                pl.BlockSpec((None, 4, s_blk, LANES),
                             lambda n, b, im: (b, 0, n, 0)),
            ],
            out_specs=pl.BlockSpec((None, 4, s_blk, LANES),
                                   lambda n, b, im: (b, 0, n, 0)),
        ),
        compiler_params=pltpu.CompilerParams(
            dimension_semantics=("parallel", "parallel")),
    )(im_info.astype(jnp.float32), anchors_cm, deltas_cm)

    # Stay coordinate-major: no full-N transpose back.
    return out_cm.reshape(B, 4, n_pad)[:, :, :N]   # (B, 4, N)


# -------------------- Pallas kernel 2: NMS cross-chunk suppression ----------
def _nms_suppress_kernel(chunk_ref, keep_ref, boxes_ref, out_ref, *, thresh):
    # chunk_ref : (C, 4)  decided chunk boxes (sublane-major)
    # keep_ref  : (C, 1)  keep flags (1.0 / 0.0)
    # boxes_ref : (4, Tn) a strip of later boxes (coordinate-major)
    # out_ref   : (1, Tn) 1.0 if suppressed by any kept chunk box
    cx1 = chunk_ref[:, 0:1]
    cy1 = chunk_ref[:, 1:2]
    cx2 = chunk_ref[:, 2:3]
    cy2 = chunk_ref[:, 3:4]
    kflag = keep_ref[...]

    bx1 = boxes_ref[0:1, :]
    by1 = boxes_ref[1:2, :]
    bx2 = boxes_ref[2:3, :]
    by2 = boxes_ref[3:4, :]

    c_area = (cx2 - cx1 + 1.0) * (cy2 - cy1 + 1.0)      # (C, 1)
    b_area = (bx2 - bx1 + 1.0) * (by2 - by1 + 1.0)      # (1, Tn)

    w = jnp.maximum(jnp.minimum(cx2, bx2) - jnp.maximum(cx1, bx1) + 1.0, 0.0)
    h = jnp.maximum(jnp.minimum(cy2, by2) - jnp.maximum(cy1, by1) + 1.0, 0.0)
    inter = w * h                                        # (C, Tn)
    iou = inter / (c_area + b_area - inter)
    sup = jnp.where((iou > thresh) & (kflag > 0.5), 1.0, 0.0)
    out_ref[...] = jnp.max(sup, axis=0, keepdims=True)   # (1, Tn)


def _nms_cross_chunk_suppress(chunk_cm, keep_c, boxes_cm, thresh):
    """chunk_cm (4,C), keep_c (C,) bool, boxes_cm (4,Kp) -> suppressed (Kp,)."""
    C = chunk_cm.shape[1]
    Kp = boxes_cm.shape[1]
    tn = 256
    for cand in (1024, 512):
        if Kp % cand == 0:
            tn = cand
            break

    chunk_sm = chunk_cm.T                                # (C, 4)
    keep_f = keep_c.astype(jnp.float32)[:, None]         # (C, 1)

    out = pl.pallas_call(
        functools.partial(_nms_suppress_kernel, thresh=thresh),
        out_shape=jax.ShapeDtypeStruct((1, Kp), jnp.float32),
        grid=(Kp // tn,),
        in_specs=[
            pl.BlockSpec((C, 4), lambda n: (0, 0)),
            pl.BlockSpec((C, 1), lambda n: (0, 0)),
            pl.BlockSpec((4, tn), lambda n: (0, n)),
        ],
        out_specs=pl.BlockSpec((1, tn), lambda n: (0, n)),
        compiler_params=pltpu.CompilerParams(
            dimension_semantics=("parallel",)),
    )(chunk_sm, keep_f, boxes_cm)
    return out[0]                                        # (Kp,)


# -------------------- blocked greedy NMS ------------------------------------
def _iou_cm(a_cm, b_cm):
    """IoU between (4,Na) and (4,Nb) coordinate-major box sets -> (Na,Nb)."""
    ax1, ay1, ax2, ay2 = (a_cm[0][:, None], a_cm[1][:, None],
                          a_cm[2][:, None], a_cm[3][:, None])
    bx1, by1, bx2, by2 = (b_cm[0][None, :], b_cm[1][None, :],
                          b_cm[2][None, :], b_cm[3][None, :])
    a_area = (ax2 - ax1 + 1.0) * (ay2 - ay1 + 1.0)
    b_area = (bx2 - bx1 + 1.0) * (by2 - by1 + 1.0)
    w = jnp.maximum(jnp.minimum(ax2, bx2) - jnp.maximum(ax1, bx1) + 1.0, 0.0)
    h = jnp.maximum(jnp.minimum(ay2, by2) - jnp.maximum(ay1, by1) + 1.0, 0.0)
    inter = w * h
    return inter / (a_area + b_area - inter)


def blocked_greedy_nms_cm(boxes_cm, thresh, chunk=256):
    """boxes_cm (4,K) sorted by score desc -> keep mask (K,) bool.

    Blocked greedy NMS equivalent to the sequential algorithm: within-chunk
    suppression is sequential (C-iteration fori_loop over a CxC IoU block);
    cross-chunk suppression of all later boxes uses the Pallas IoU-strip
    kernel.  The full KxK IoU matrix is never materialized.
    """
    K = boxes_cm.shape[1]
    Kp = ((K + chunk - 1) // chunk) * chunk
    boxes_p = jnp.pad(boxes_cm, ((0, 0), (0, Kp - K)))   # pad boxes: zeros (area 1)
    keep = jnp.ones((Kp,), jnp.bool_)
    idx = jnp.arange(Kp)
    cidx = jnp.arange(chunk)

    for lo in range(0, Kp, chunk):
        boxes_c = boxes_p[:, lo:lo + chunk]              # (4, C)
        keep_c = keep[lo:lo + chunk]                     # (C,)

        # ---- within-chunk sequential greedy (inherently data-dependent) ----
        # TODO(synk): this loop is the irreducibly sequential part of greedy NMS.
        iou_cc = _iou_cm(boxes_c, boxes_c)               # (C, C)

        def body(i, kc):
            sup = (iou_cc[i] > thresh) & (cidx > i) & kc[i]
            return kc & jnp.logical_not(sup)

        keep_c = lax.fori_loop(0, chunk, body, keep_c)
        keep = keep.at[lo:lo + chunk].set(keep_c)

        # ---- suppress every later box with this chunk's kept boxes ----
        if lo + chunk < Kp:
            sup_all = _nms_cross_chunk_suppress(boxes_c, keep_c, boxes_p, thresh)
            keep = keep & jnp.logical_not((sup_all > 0.5) & (idx >= lo + chunk))

    return keep[:K]


# -------------------- module ------------------------------------------------
class ProposalLayerFPN:
    def __init__(self, feat_stride, scales, ratios):
        self._anchor_ratios = ratios
        self._feat_stride = feat_stride
        self._fpn_scales = np.array([8, 16, 32, 64, 128])
        self._fpn_feature_strides = np.array([4, 8, 16, 32, 64])
        self._fpn_anchor_stride = 1

    def forward(self, inputs):
        scores_all = inputs[0][:, :, 1]      # (B, N) fg scores
        bbox_deltas = inputs[1]              # (B, N, 4)
        im_info = inputs[2]                  # (B, 3)
        _cfg_key = inputs[3]
        feat_shapes = inputs[4]

        pre_nms_topN = 12000
        post_nms_topN = 2000
        nms_thresh = 0.7

        B, N = scores_all.shape
        anchors = jnp.asarray(generate_anchors_all_pyramids(
            self._fpn_scales, self._anchor_ratios, feat_shapes,
            self._fpn_feature_strides, self._fpn_anchor_stride))
        assert anchors.shape[0] == N

        # ---- Pallas hot path: decode + clip all anchors, coordinate-major ----
        proposals_cm = bbox_transform_clip_pallas(anchors, bbox_deltas, im_info)

        K = min(pre_nms_topN, N)             # equivalent to reference truncation
        k_out = min(K, post_nms_topN)

        output = jnp.zeros((B, post_nms_topN, 5), jnp.float32)
        for i in range(B):
            order = jnp.argsort(-scores_all[i])[:K]          # descending top-K
            props_sorted_cm = proposals_cm[i][:, order]      # (4, K)

            keep = blocked_greedy_nms_cm(props_sorted_cm, nms_thresh)
            num_keep = jnp.sum(keep.astype(jnp.int32))

            # stable "kept first" reordering (preserves score order among kept)
            rank = jnp.where(keep, jnp.arange(K), K + jnp.arange(K))
            sel = jnp.argsort(rank)[:k_out]
            props_sel = props_sorted_cm[:, sel].T            # (k_out, 4) small
            valid = (jnp.arange(k_out) < num_keep)[:, None]
            props_sel = jnp.where(valid, props_sel, 0.0)

            output = output.at[i, :, 0].set(float(i))
            output = output.at[i, :k_out, 1:].set(props_sel)
        return output


# -------------------- demo ---------------------------------------------------
if __name__ == "__main__":
    key = jax.random.PRNGKey(0)

    batch_size = 2
    ratios = [0.5, 1.0, 2.0]
    # small FPN feature-map shapes (H, W) per level
    feat_shapes = [(8, 8), (4, 4), (2, 2), (1, 1), (1, 1)]
    num_anchors = sum(h * w for h, w in feat_shapes) * len(ratios)  # 258

    k1, k2 = jax.random.split(key)
    rpn_cls_prob = jax.random.uniform(k1, (batch_size, num_anchors, 2),
                                      dtype=jnp.float32)
    bbox_deltas = 0.1 * jax.random.normal(k2, (batch_size, num_anchors, 4),
                                          dtype=jnp.float32)
    im_info = jnp.array([[64.0, 64.0, 1.0],
                         [48.0, 80.0, 1.0]], dtype=jnp.float32)

    layer = ProposalLayerFPN(feat_stride=16, scales=[8, 16, 32], ratios=ratios)
    out = layer.forward([rpn_cls_prob, bbox_deltas, im_info, "TEST",
                         feat_shapes])
    out = jax.block_until_ready(out)

    assert out.shape == (batch_size, 2000, 5)
    assert bool(jnp.all(jnp.isfinite(out)))
    print("KERNEL_OK")
</pallas_src>

<mosaic_0001>
module attributes {stable_mosaic.version = 11 : i64} {
  func.func @_decode_clip_kernel(%arg0: i32, %arg1: i32, %arg2: memref<2x3xf32, #tpu.memory_space<smem>>, %arg3: memref<4x8x128xf32, #tpu.memory_space<vmem>>, %arg4: memref<1x4x8x128xf32, #tpu.memory_space<vmem>>, %arg5: memref<1x4x8x128xf32, #tpu.memory_space<vmem>>) attributes {dimension_semantics = [#tpu.dimension_semantics<parallel>, #tpu.dimension_semantics<parallel>], iteration_bounds = array<i64: 1, 2>, scalar_prefetch = 1 : i64, scratch_operands = 0 : i64, tpu.core_type = #tpu.core_type<tc>, window_params = [{transform_indices = @transform_0, window_bounds = array<i64: 4, 8, 128>}, {transform_indices = @transform_1, window_bounds = array<i64: 1, 4, 8, 128>}, {transform_indices = @transform_2, window_bounds = array<i64: 1, 4, 8, 128>}]} {
    %c0 = arith.constant 0 : index
    %c0_0 = arith.constant 0 : index
    %c0_1 = arith.constant 0 : index
    %0 = vector.load %arg3[%c0, %c0_0, %c0_1] : memref<4x8x128xf32, #tpu.memory_space<vmem>>, vector<1x8x128xf32>
    %1 = vector.shape_cast %0 : vector<1x8x128xf32> to vector<8x128xf32>
    %c1 = arith.constant 1 : index
    %c0_2 = arith.constant 0 : index
    %c0_3 = arith.constant 0 : index
    %2 = vector.load %arg3[%c1, %c0_2, %c0_3] : memref<4x8x128xf32, #tpu.memory_space<vmem>>, vector<1x8x128xf32>
    %3 = vector.shape_cast %2 : vector<1x8x128xf32> to vector<8x128xf32>
    %c2 = arith.constant 2 : index
    %c0_4 = arith.constant 0 : index
    %c0_5 = arith.constant 0 : index
    %4 = vector.load %arg3[%c2, %c0_4, %c0_5] : memref<4x8x128xf32, #tpu.memory_space<vmem>>, vector<1x8x128xf32>
    %5 = vector.shape_cast %4 : vector<1x8x128xf32> to vector<8x128xf32>
    %c3 = arith.constant 3 : index
    %c0_6 = arith.constant 0 : index
    %c0_7 = arith.constant 0 : index
    %6 = vector.load %arg3[%c3, %c0_6, %c0_7] : memref<4x8x128xf32, #tpu.memory_space<vmem>>, vector<1x8x128xf32>
    %7 = vector.shape_cast %6 : vector<1x8x128xf32> to vector<8x128xf32>
    %c0_8 = arith.constant 0 : index
    %c0_9 = arith.constant 0 : index
    %c0_10 = arith.constant 0 : index
    %c0_11 = arith.constant 0 : index
    %8 = vector.load %arg4[%c0_8, %c0_9, %c0_10, %c0_11] : memref<1x4x8x128xf32, #tpu.memory_space<vmem>>, vector<1x1x8x128xf32>
    %9 = vector.shape_cast %8 : vector<1x1x8x128xf32> to vector<8x128xf32>
    %c0_12 = arith.constant 0 : index
    %c1_13 = arith.constant 1 : index
    %c0_14 = arith.constant 0 : index
    %c0_15 = arith.constant 0 : index
    %10 = vector.load %arg4[%c0_12, %c1_13, %c0_14, %c0_15] : memref<1x4x8x128xf32, #tpu.memory_space<vmem>>, vector<1x1x8x128xf32>
    %11 = vector.shape_cast %10 : vector<1x1x8x128xf32> to vector<8x128xf32>
    %c0_16 = arith.constant 0 : index
    %c2_17 = arith.constant 2 : index
    %c0_18 = arith.constant 0 : index
    %c0_19 = arith.constant 0 : index
    %12 = vector.load %arg4[%c0_16, %c2_17, %c0_18, %c0_19] : memref<1x4x8x128xf32, #tpu.memory_space<vmem>>, vector<1x1x8x128xf32>
    %13 = vector.shape_cast %12 : vector<1x1x8x128xf32> to vector<8x128xf32>
    %c0_20 = arith.constant 0 : index
    %c3_21 = arith.constant 3 : index
    %c0_22 = arith.constant 0 : index
    %c0_23 = arith.constant 0 : index
    %14 = vector.load %arg4[%c0_20, %c3_21, %c0_22, %c0_23] : memref<1x4x8x128xf32, #tpu.memory_space<vmem>>, vector<1x1x8x128xf32>
    %15 = vector.shape_cast %14 : vector<1x1x8x128xf32> to vector<8x128xf32>
    %16 = arith.subf %5, %1 : vector<8x128xf32>
    %cst = arith.constant 1.000000e+00 : f32
    %17 = vector.broadcast %cst : f32 to vector<8x128xf32>
    %18 = arith.addf %16, %17 : vector<8x128xf32>
    %19 = arith.subf %7, %3 : vector<8x128xf32>
    %cst_24 = arith.constant 1.000000e+00 : f32
    %20 = vector.broadcast %cst_24 : f32 to vector<8x128xf32>
    %21 = arith.addf %19, %20 : vector<8x128xf32>
    %cst_25 = arith.constant 5.000000e-01 : f32
    %22 = vector.broadcast %cst_25 : f32 to vector<8x128xf32>
    %23 = arith.mulf %22, %18 : vector<8x128xf32>
    %24 = arith.addf %1, %23 : vector<8x128xf32>
    %cst_26 = arith.constant 5.000000e-01 : f32
    %25 = vector.broadcast %cst_26 : f32 to vector<8x128xf32>
    %26 = arith.mulf %25, %21 : vector<8x128xf32>
    %27 = arith.addf %3, %26 : vector<8x128xf32>
    %28 = arith.mulf %9, %18 : vector<8x128xf32>
    %29 = arith.addf %28, %24 : vector<8x128xf32>
    %30 = arith.mulf %11, %21 : vector<8x128xf32>
    %31 = arith.addf %30, %27 : vector<8x128xf32>
    %32 = math.exp %13 : vector<8x128xf32>
    %33 = arith.mulf %32, %18 : vector<8x128xf32>
    %34 = math.exp %15 : vector<8x128xf32>
    %35 = arith.mulf %34, %21 : vector<8x128xf32>
    %cst_27 = arith.constant 5.000000e-01 : f32
    %36 = vector.broadcast %cst_27 : f32 to vector<8x128xf32>
    %37 = arith.mulf %36, %33 : vector<8x128xf32>
    %38 = arith.subf %29, %37 : vector<8x128xf32>
    %cst_28 = arith.constant 5.000000e-01 : f32
    %39 = vector.broadcast %cst_28 : f32 to vector<8x128xf32>
    %40 = arith.mulf %39, %35 : vector<8x128xf32>
    %41 = arith.subf %31, %40 : vector<8x128xf32>
    %cst_29 = arith.constant 5.000000e-01 : f32
    %42 = vector.broadcast %cst_29 : f32 to vector<8x128xf32>
    %43 = arith.mulf %42, %33 : vector<8x128xf32>
    %44 = arith.addf %29, %43 : vector<8x128xf32>
    %cst_30 = arith.constant 5.000000e-01 : f32
    %45 = vector.broadcast %cst_30 : f32 to vector<8x128xf32>
    %46 = arith.mulf %45, %35 : vector<8x128xf32>
    %47 = arith.addf %31, %46 : vector<8x128xf32>
    %48 = arith.index_cast %arg1 : i32 to index
    %c0_31 = arith.constant 0 : index
    %49 = memref.load %arg2[%48, %c0_31] : memref<2x3xf32, #tpu.memory_space<smem>>
    %50 = arith.index_cast %arg1 : i32 to index
    %c1_32 = arith.constant 1 : index
    %51 = memref.load %arg2[%50, %c1_32] : memref<2x3xf32, #tpu.memory_space<smem>>
    %cst_33 = arith.constant 1.000000e+00 : f32
    %52 = arith.subf %51, %cst_33 : f32
    %cst_34 = arith.constant 0.000000e+00 : f32
    %53 = vector.broadcast %cst_34 : f32 to vector<8x128xf32>
    %54 = arith.maximumf %53, %38 : vector<8x128xf32>
    %55 = vector.broadcast %52 : f32 to vector<8x128xf32>
    %56 = arith.minimumf %55, %54 : vector<8x128xf32>
    %cst_35 = arith.constant 1.000000e+00 : f32
    %57 = arith.subf %49, %cst_35 : f32
    %cst_36 = arith.constant 0.000000e+00 : f32
    %58 = vector.broadcast %cst_36 : f32 to vector<8x128xf32>
    %59 = arith.maximumf %58, %41 : vector<8x128xf32>
    %60 = vector.broadcast %57 : f32 to vector<8x128xf32>
    %61 = arith.minimumf %60, %59 : vector<8x128xf32>
    %cst_37 = arith.constant 1.000000e+00 : f32
    %62 = arith.subf %51, %cst_37 : f32
    %cst_38 = arith.constant 0.000000e+00 : f32
    %63 = vector.broadcast %cst_38 : f32 to vector<8x128xf32>
    %64 = arith.maximumf %63, %44 : vector<8x128xf32>
    %65 = vector.broadcast %62 : f32 to vector<8x128xf32>
    %66 = arith.minimumf %65, %64 : vector<8x128xf32>
    %cst_39 = arith.constant 1.000000e+00 : f32
    %67 = arith.subf %49, %cst_39 : f32
    %cst_40 = arith.constant 0.000000e+00 : f32
    %68 = vector.broadcast %cst_40 : f32 to vector<8x128xf32>
    %69 = arith.maximumf %68, %47 : vector<8x128xf32>
    %70 = vector.broadcast %67 : f32 to vector<8x128xf32>
    %71 = arith.minimumf %70, %69 : vector<8x128xf32>
    %72 = vector.shape_cast %56 : vector<8x128xf32> to vector<1x8x128xf32>
    %73 = vector.shape_cast %61 : vector<8x128xf32> to vector<1x8x128xf32>
    %74 = vector.shape_cast %66 : vector<8x128xf32> to vector<1x8x128xf32>
    %75 = vector.shape_cast %71 : vector<8x128xf32> to vector<1x8x128xf32>
    %76 = tpu.concatenate %72, %73, %74, %75 in 0 : vector<1x8x128xf32>, vector<1x8x128xf32>, vector<1x8x128xf32>, vector<1x8x128xf32> -> vector<4x8x128xf32>
    %c0_41 = arith.constant 0 : index
    %c0_42 = arith.constant 0 : index
    %c0_43 = arith.constant 0 : index
    %c0_44 = arith.constant 0 : index
    %77 = vector.load %arg5[%c0_41, %c0_42, %c0_43, %c0_44] : memref<1x4x8x128xf32, #tpu.memory_space<vmem>>, vector<1x4x8x128xf32>
    %78 = vector.shape_cast %77 : vector<1x4x8x128xf32> to vector<4x8x128xf32>
    %79 = vector.shape_cast %76 : vector<4x8x128xf32> to vector<1x4x8x128xf32>
    tpu.vector_store %arg5[%c0_41, %c0_42, %c0_43, %c0_44], %79 {strides = array<i32>} : memref<1x4x8x128xf32, #tpu.memory_space<vmem>>, vector<1x4x8x128xf32>,
    return
  }
  func.func @transform_0(%arg0: i32, %arg1: i32, %arg2: memref<2x3xf32, #tpu.memory_space<smem>>) -> (i32, i32, i32) {
    %c0_i32 = arith.constant 0 : i32
    %c0_i32_0 = arith.constant 0 : i32
    %c0_i32_1 = arith.constant 0 : i32
    return %c0_i32, %arg0, %c0_i32_0 : i32, i32, i32
  }
  func.func @transform_1(%arg0: i32, %arg1: i32, %arg2: memref<2x3xf32, #tpu.memory_space<smem>>) -> (i32, i32, i32, i32) {
    %c0_i32 = arith.constant 0 : i32
    %c0_i32_0 = arith.constant 0 : i32
    %c0_i32_1 = arith.constant 0 : i32
    return %arg1, %c0_i32, %arg0, %c0_i32_0 : i32, i32, i32, i32
  }
  func.func @transform_2(%arg0: i32, %arg1: i32, %arg2: memref<2x3xf32, #tpu.memory_space<smem>>) -> (i32, i32, i32, i32) {
    %c0_i32 = arith.constant 0 : i32
    %c0_i32_0 = arith.constant 0 : i32
    %c0_i32_1 = arith.constant 0 : i32
    return %arg1, %c0_i32, %arg0, %c0_i32_0 : i32, i32, i32, i32
  }
}

</mosaic_0001>

<llo_original>
// kernel: tpu_custom_call.1
$region0: #{tpu_custom_call.1}
  #allocation0 [shape = 'u32[]', space=smem, size = 0x4, offset = 0x4, fixed_abs, tag = 'smem constant byte address 0x4 - core index']
  #allocation1 [shape = 'u32[144,128]{1,0:T(1,128)}', space=vmem, size = 0x12000, scoped, tag = 'internal scratch']
  #allocation2 [shape = 's32[1]{0}', space=sflag, size = 0x4, scoped, tag = 'scoped memory for tpu_custom_call.1']
  #allocation3 [shape = 'u8[1024]{0}', space=smem, size = 0x400, scoped, tag = 'prefetched SMEM operand 0']
  %s0 = inlined_call_operand.hbm [shape: f32[2,3], index: 0, kind: input, shape index: {}]
  %s1 = inlined_call_operand.hbm [shape: f32[4,8,128], index: 1, kind: input, shape index: {}]
  %s2 = inlined_call_operand.hbm [shape: f32[2,4,8,128], index: 2, kind: input, shape index: {}]
  %s3 = inlined_call_operand.hbm [shape: f32[2,4,8,128], index: 3, kind: output, shape index: {}]
  %s4 = sld [smem:[#allocation0]]
  $region49: #{tpu_custom_call.1} parent=0
    _
  %s6 = ssub.s32 1, %s4
  %s7 = scalar_select 0, %s6, %s4
  %9 = dma.hbm_to_smem %s0, 32, [#allocation3], [#allocation2]
  %10 = dma.done [#allocation2], 32
  %11 = sfence
  $region1: #{tpu_custom_call.1} parent=0
    #allocation4 [shape = 'u8[16384]{0}', space=vmem, size = 0x4000, scoped, tag = 'input window, operand 1, single buffered']
    #allocation5 [shape = 's32[2]{0}', space=sflag, size = 0x8, scoped, tag = 'scoped memory for tpu_custom_call.1']
    #allocation6 [shape = 's32[2]{0}', space=sflag, size = 0x8, scoped, tag = 'scoped memory for tpu_custom_call.1']
    #allocation7 [shape = 'u8[32768]{0}', space=vmem, size = 0x8000, scoped, tag = 'input window, operand 2']
    #allocation8 [shape = 's32[2]{0}', space=sflag, size = 0x8, scoped, tag = 'scoped memory for tpu_custom_call.1']
    #allocation9 [shape = 'u8[32768]{0}', space=vmem, size = 0x8000, scoped, tag = 'output window, operand 0']
    %12 = vsyncpa [#allocation5], 0
    %13 = vsyncpa [#allocation8], 0
    %s14 = scalar_lea.sflag [#allocation8], 1
    %15 = vsyncpa %s14, 0
    %16 = vsyncpa [#allocation6], 0
    %s17 = scalar_lea.sflag [#allocation6], 1
    %18 = vsyncpa %s17, 0
    loop: start=0, step=1, limit=4
    $region2: #{tpu_custom_call.1} parent=1 // loop_pre_header
      _
    $region3: #{tpu_custom_call.1} parent=1 // loop_header
      %s20 = sphi 0, %s24
      %p21 = scmp.ge.s32.totalorder %s20, 4
      %s27 = sphi 0, %s39
      %s28 = sphi 0, %s35
      %s29 = sphi 0, %s27
      %s30 = sphi 0, %s28
      %s31 = sphi 0, %s29
      %s32 = sphi 0, %s30
      %s42 = sphi 0, %s44
      %s45 = sphi 0, %s42
      %s46 = sphi 0, %s45
      %s62 = sphi 0, %s46
      %s70 = sphi 0, %s72
      %s73 = sphi 0, %s70
      %s74 = sphi 0, %s73
      %s90 = sphi 0, %s74
      %s98 = sphi 0, %s100
      %s101 = sphi 0, %s98
      %s102 = sphi 0, %s101
      %s118 = sphi 0, %s102
    $region4: #{tpu_custom_call.1} parent=1 // loop_header_branch
      %23 = sbr.rel (%p21) target = $region8
    $region5: #{tpu_custom_call.1} parent=1 // loop_body
      %s25 = ssub.s32 %s20, 1
      %s26 = ssub.s32 %s20, 2
      %s33 = sadd.s32 1, %s28
      %p34 = scmp.ge.s32.totalorder %s33, 2
      %s35 = scalar_select %p34, 0, %s33
      %s36 = sadd.s32 1, %s27
      %s37 = scalar_select %p34, %s36, %s27
      %p38 = scmp.ge.s32.totalorder %s37, 1
      %s39 = scalar_select %p38, 0, %s37
      %s40 = ssub.s32 %s27, %s39
      %p41 = scmp.eq.s32.totalorder %s40, 0
      %s43 = sadd.s32 %s42, 1
      %s44 = scalar_select %p41, %s42, %s43
      %p47 = pneg %p41
      %p48 = scmp.eq.s32.totalorder %s20, 1
      %p49 = por %p47, %p48
      %p50 = scmp.ne.s32.totalorder %s42, %s45
      %p51 = scmp.eq.s32.totalorder %s20, 0
      %p52 = por %p50, %p51
      %p53 = scmp.ne.s32.totalorder %s42, %s45
      %p54 = scmp.eq.s32.totalorder %s25, 1
      %p55 = por %p53, %p54
      %p56 = scmp.ne.s32.totalorder %s45, %s46
      %p57 = scmp.eq.s32.totalorder %s25, 0
      %p58 = por %p56, %p57
      %p59 = scmp.ne.s32.totalorder %s45, %s46
      %p60 = scmp.eq.s32.totalorder %s26, 1
      %p61 = por %p59, %p60
      %p63 = scmp.ne.s32.totalorder %s46, %s62
      %p64 = scmp.eq.s32.totalorder %s26, 0
      %p65 = por %p63, %p64
      %s66 = ssub.s32 %s28, %s35
      %s67 = ssub.s32 %s27, %s39
      %s68 = sor.u32 %s66, %s67
      %p69 = scmp.eq.s32.totalorder %s68, 0
      %s71 = sadd.s32 %s70, 1
      %s72 = scalar_select %p69, %s70, %s71
      %p75 = pneg %p69
      %p76 = scmp.eq.s32.totalorder %s20, 1
      %p77 = por %p75, %p76
      %p78 = scmp.ne.s32.totalorder %s70, %s73
      %p79 = scmp.eq.s32.totalorder %s20, 0
      %p80 = por %p78, %p79
      %p81 = scmp.ne.s32.totalorder %s70, %s73
      %p82 = scmp.eq.s32.totalorder %s25, 1
      %p83 = por %p81, %p82
      %p84 = scmp.ne.s32.totalorder %s73, %s74
      %p85 = scmp.eq.s32.totalorder %s25, 0
      %p86 = por %p84, %p85
      %p87 = scmp.ne.s32.totalorder %s73, %s74
      %p88 = scmp.eq.s32.totalorder %s26, 1
      %p89 = por %p87, %p88
      %p91 = scmp.ne.s32.totalorder %s74, %s90
      %p92 = scmp.eq.s32.totalorder %s26, 0
      %p93 = por %p91, %p92
      %s94 = ssub.s32 %s28, %s35
      %s95 = ssub.s32 %s27, %s39
      %s96 = sor.u32 %s94, %s95
      %p97 = scmp.eq.s32.totalorder %s96, 0
      %s99 = sadd.s32 %s98, 1
      %s100 = scalar_select %p97, %s98, %s99
      %p103 = pneg %p97
      %p104 = scmp.eq.s32.totalorder %s20, 1
      %p105 = por %p103, %p104
      %p106 = scmp.ne.s32.totalorder %s98, %s101
      %p107 = scmp.eq.s32.totalorder %s20, 0
      %p108 = por %p106, %p107
      %p109 = scmp.ne.s32.totalorder %s98, %s101
      %p110 = scmp.eq.s32.totalorder %s25, 1
      %p111 = por %p109, %p110
      %p112 = scmp.ne.s32.totalorder %s101, %s102
      %p113 = scmp.eq.s32.totalorder %s25, 0
      %p114 = por %p112, %p113
      %p115 = scmp.ne.s32.totalorder %s101, %s102
      %p116 = scmp.eq.s32.totalorder %s26, 1
      %p117 = por %p115, %p116
      %p119 = scmp.ne.s32.totalorder %s102, %s118
      %p120 = scmp.eq.s32.totalorder %s26, 0
      %p121 = por %p119, %p120
      %p122 = scmp.le.s32.totalorder 1, %s20
      %p123 = scmp.lt.s32.totalorder %s20, 3
      %p124 = pnand %p122, %p123
      %p125 = pneg %p124
      // Predicated region
      $region9: #{tpu_custom_call.1} parent=5 // pred_check
        _
      $region10: #{tpu_custom_call.1} parent=5 // pred_check_branch
        %127 = sbr.rel (%p124) target = $region12
      $region11: #{tpu_custom_call.1} parent=5 // pred_region
        %s128 = ssub.s32 %s20, 1
        // Predicated region
        $region13: #{tpu_custom_call.1} parent=11 // pred_check
          %p129 = pneg %p58
        $region14: #{tpu_custom_call.1} parent=11 // pred_check_branch
          %131 = sbr.rel (%p129) target = $region16
        $region15: #{tpu_custom_call.1} parent=11 // pred_region
          %s133 = ssub.s32 512, 512
          %134 = vsyncadd [#allocation5], %s133
          %s135 = smul.addr %s29, 128
          %s136 = scalar_lea.hbm %s1, %s135
          %s137 = sshll.u32 [#allocation4], 4
          %s138 = int_to_ptr.vmem [resolvable:$true] %s137
          %143 = dma.hbm_to_vmem [thread:$0]  %s136, 512, %s138, [#allocation5], 128, 128, 8
        $region16: #{tpu_custom_call.1} parent=11 // pred_fallthru
          _
      $region12: #{tpu_custom_call.1} parent=5 // pred_fallthru
        _
      %p144 = scmp.lt.s32.totalorder %s20, 2
      // Predicated region
      $region17: #{tpu_custom_call.1} parent=5 // pred_check
        %p145 = pneg %p144
      $region18: #{tpu_custom_call.1} parent=5 // pred_check_branch
        %147 = sbr.rel (%p145) target = $region20
      $region19: #{tpu_custom_call.1} parent=5 // pred_region
        // Predicated region
        $region21: #{tpu_custom_call.1} parent=19 // pred_check
          %p148 = pneg %p80
        $region22: #{tpu_custom_call.1} parent=19 // pred_check_branch
          %150 = sbr.rel (%p148) target = $region24
        $region23: #{tpu_custom_call.1} parent=19 // pred_region
          %s151 = sand.u32 %s70, 1
          %s152 = scalar_lea.sflag [#allocation8], %s151
          %s153 = sand.u32 %s70, 1
          %s154 = smul.addr %s153, 32
          %s155 = scalar_lea.vmem [#allocation7], %s154
          %s157 = ssub.s32 512, 512
          %158 = vsyncadd %s152, %s157
          %s159 = smul.addr %s28, 4
          %s160 = sadd.s32 %s27, %s159
          %s161 = smul.addr %s160, 128
          %s162 = scalar_lea.hbm %s2, %s161
          %s163 = sshll.u32 %s155, 4
          %s164 = int_to_ptr.vmem [resolvable:$true] %s163
          %169 = dma.hbm_to_vmem [thread:$0]  %s162, 512, %s164, %s152, 128, 128, 8
        $region24: #{tpu_custom_call.1} parent=19 // pred_fallthru
          _
      $region20: #{tpu_custom_call.1} parent=5 // pred_fallthru
        _
      %p170 = scmp.le.s32.totalorder 1, %s20
      %p171 = scmp.lt.s32.totalorder %s20, 3
      %p172 = pnand %p170, %p171
      %p173 = pneg %p172
      // Predicated region
      $region25: #{tpu_custom_call.1} parent=5 // pred_check
        _
      $region26: #{tpu_custom_call.1} parent=5 // pred_check_branch
        %175 = sbr.rel (%p172) target = $region28
      $region27: #{tpu_custom_call.1} parent=5 // pred_region
        %s176 = ssub.s32 %s20, 1
        // Predicated region
        $region29: #{tpu_custom_call.1} parent=27 // pred_check
          %p177 = pneg %p58
        $region30: #{tpu_custom_call.1} parent=27 // pred_check_branch
          %179 = sbr.rel (%p177) target = $region32
        $region31: #{tpu_custom_call.1} parent=27 // pred_region
          %180 = dma.done [#allocation5], 512
        $region32: #{tpu_custom_call.1} parent=27 // pred_fallthru
          _
        %s181 = sand.u32 %s73, 1
        %s182 = scalar_lea.sflag [#allocation8], %s181
        %s183 = sand.u32 %s73, 1
        %s184 = smul.addr %s183, 32
        %s185 = scalar_lea.vmem [#allocation7], %s184
        // Predicated region
        $region33: #{tpu_custom_call.1} parent=27 // pred_check
          %p186 = pneg %p86
        $region34: #{tpu_custom_call.1} parent=27 // pred_check_branch
          %188 = sbr.rel (%p186) target = $region36
        $region35: #{tpu_custom_call.1} parent=27 // pred_region
          %189 = dma.done %s182, 512
        $region36: #{tpu_custom_call.1} parent=27 // pred_fallthru
          _
        %p190 = pneg %p58
        %p191 = pneg %p55
        %s192 = sand.u32 %s73, 1
        %s193 = scalar_lea.sflag [#allocation8], %s192
        %s194 = sand.u32 %s73, 1
        %s195 = smul.addr %s194, 32
        %s196 = scalar_lea.vmem [#allocation7], %s195
        %p197 = pneg %p86
        %p198 = pneg %p83
        %p199 = pneg %p114
        %p200 = pneg %p111
        %s201 = sand.u32 %s101, 1
        %s202 = scalar_lea.sflag [#allocation6], %s201
        %s203 = sand.u32 %s101, 1
        %s204 = smul.addr %s203, 32
        %s205 = scalar_lea.vmem [#allocation9], %s204
        %v206 = vld [vmem:[#allocation4] sm:$0xff]
        %s207 = scalar_lea.vmem [#allocation4], 8
        %v208 = vld [vmem:[%s207] sm:$0xff]
        %s209 = scalar_lea.vmem [#allocation4], 16
        %v210 = vld [vmem:[%s209] sm:$0xff]
        %s211 = scalar_lea.vmem [#allocation4], 24
        %v212 = vld [vmem:[%s211] sm:$0xff]
        %v213 = vld [vmem:[%s185] sm:$0xff]
        %s214 = scalar_lea.vmem %s185, 8 [#allocation7]
        %v215 = vld [vmem:[%s214] sm:$0xff]
        %s216 = scalar_lea.vmem %s185, 16 [#allocation7]
        %v217 = vld [vmem:[%s216] sm:$0xff]
        %s218 = scalar_lea.vmem %s185, 24 [#allocation7]
        %v219 = vld [vmem:[%s218] sm:$0xff]
        %v220 = vsub.f32 %v210, %v206
        %v221 = vadd.f32 %v220, 1.0
        %v222 = vsub.f32 %v212, %v208
        %v223 = vadd.f32 %v222, 1.0
        %v224 = vmul.f32 %v221, 0.5
        %v225 = vadd.f32 %v206, %v224
        %v226 = vmul.f32 %v223, 0.5
        %v227 = vadd.f32 %v208, %v226
        %v228 = vmul.f32 %v213, %v221
        %v229 = vadd.f32 %v228, %v225
        %v230 = vmul.f32 %v215, %v223
        %v231 = vadd.f32 %v230, %v227
        %v232 = vmul.f32 %v217, 1.442695
        %v233 = vpow.pop %v232
        %v234 = vmul.f32 %v233, %v221
        %v235 = vmul.f32 %v219, 1.442695
        %v236 = vpow.pop %v235
        %v237 = vmul.f32 %v236, %v223
        %v238 = vmul.f32 %v234, 0.5
        %v239 = vsub.f32 %v229, %v238
        %v240 = vmul.f32 %v237, 0.5
        %v241 = vsub.f32 %v231, %v240
        %v242 = vadd.f32 %v229, %v238
        %v243 = vadd.f32 %v231, %v240
        %s244 = smul.u32 %s30, 128
        %s245 = sld [smem:[#allocation3 + %s244]]
        %s246 = sadd.s32 %s244, 1
        %s247 = sld [smem:[#allocation3 + %s246]]
        %s248 = ssub.f32 %s247, 1.0
        %v249 = vmax.f32 %v239, 0.0
        %v250 = vstv %s248
        %v251 = vmin.f32 %v250, %v249
        %s252 = ssub.f32 %s245, 1.0
        %v253 = vmax.f32 %v241, 0.0
        %v254 = vstv %s252
        %v255 = vmin.f32 %v254, %v253
        %v256 = vmax.f32 %v242, 0.0
        %v257 = vmin.f32 %v250, %v256
        %v258 = vmax.f32 %v243, 0.0
        %v259 = vmin.f32 %v254, %v258
        %260 = vst [vmem:[%s205] sm:$0xff] %v251
        %261 = vst [vmem:[%s205 + $0x8] sm:$0xff] %v255
        %262 = vst [vmem:[%s205 + $0x10] sm:$0xff] %v257
        %263 = vst [vmem:[%s205 + $0x18] sm:$0xff] %v259
        %s264 = sand.u32 %s101, 1
        %s265 = scalar_lea.sflag [#allocation6], %s264
        %s266 = sand.u32 %s101, 1
        %s267 = smul.addr %s266, 32
        %s268 = scalar_lea.vmem [#allocation9], %s267
        // Predicated region
        $region37: #{tpu_custom_call.1} parent=27 // pred_check
          %p269 = pneg %p111
        $region38: #{tpu_custom_call.1} parent=27 // pred_check_branch
          %271 = sbr.rel (%p269) target = $region40
        $region39: #{tpu_custom_call.1} parent=27 // pred_region
          %s273 = ssub.s32 512, 512
          %274 = vsyncadd %s265, %s273
          %s275 = smul.addr %s30, 4
          %s276 = sadd.s32 %s29, %s275
          %s277 = smul.addr %s276, 128
          %s278 = scalar_lea.hbm %s3, %s277
          %s279 = sshll.u32 %s268, 4
          %s280 = int_to_ptr.vmem [resolvable:$true] %s279
          %285 = dma.vmem_to_hbm [thread:$0]  %s280, 512, %s278, %s265, 128, 128, 8
        $region40: #{tpu_custom_call.1} parent=27 // pred_fallthru
          _
      $region28: #{tpu_custom_call.1} parent=5 // pred_fallthru
        _
      %p286 = scmp.le.s32.totalorder 2, %s20
      // Predicated region
      $region41: #{tpu_custom_call.1} parent=5 // pred_check
        %p287 = pneg %p286
      $region42: #{tpu_custom_call.1} parent=5 // pred_check_branch
        %289 = sbr.rel (%p287) target = $region44
      $region43: #{tpu_custom_call.1} parent=5 // pred_region
        %s290 = ssub.s32 %s20, 2
        // Predicated region
        $region45: #{tpu_custom_call.1} parent=43 // pred_check
          %p291 = pneg %p117
        $region46: #{tpu_custom_call.1} parent=43 // pred_check_branch
          %293 = sbr.rel (%p291) target = $region48
        $region47: #{tpu_custom_call.1} parent=43 // pred_region
          %s294 = sand.u32 %s102, 1
          %s295 = scalar_lea.sflag [#allocation6], %s294
          %s296 = sand.u32 %s102, 1
          %s297 = smul.addr %s296, 32
          %s298 = scalar_lea.vmem [#allocation9], %s297
          %299 = dma.done %s295, 512
        $region48: #{tpu_custom_call.1} parent=43 // pred_fallthru
          _
      $region44: #{tpu_custom_call.1} parent=5 // pred_fallthru
        _
    $region6: #{tpu_custom_call.1} parent=1 // loop_footer
      %s24 = sadd.s32 1, %s20
    $region7: #{tpu_custom_call.1} parent=1 // loop_footer_branch
      %19 = sbr.rel target = $region3
    $region8: #{tpu_custom_call.1} parent=1 // loop_exit
      _
    %300 = vsyncpa [#allocation5], 1
    %s301 = scalar_lea.sflag [#allocation5], 1
    %302 = vsyncpa %s301, 1
    %303 = vsyncpa [#allocation8], 1
    %s304 = scalar_lea.sflag [#allocation8], 1
    %305 = vsyncpa %s304, 1
    %306 = vsyncpa [#allocation6], 1
    %s307 = scalar_lea.sflag [#allocation6], 1
    %308 = vsyncpa %s307, 1

</llo_original>
